<compile_context>
chip_gen: v7x
topology: tpu7x:2x2x1
jax: 0.10.0
libtpu: 0.0.40
codegen_flags: <defaults>
</compile_context>

<pallas_src>
import functools

import jax
import jax.numpy as jnp
from jax.experimental import pallas as pl
from jax.experimental.pallas import tpu as pltpu


def _round_up(x, m):
    return ((x + m - 1) // m) * m


def _plddt_kernel(x_ref, g_ref, bta_ref, w0_ref, b0_ref, w1_ref, b1_ref,
                  w2_ref, b2_ref, o_ref, *, eps):
    # --- LayerNorm over the channel (lane) axis, stats in f32, one-pass var ---
    x = x_ref[...].astype(jnp.float32)
    mean = jnp.mean(x, axis=-1, keepdims=True)
    mean_sq = jnp.mean(x * x, axis=-1, keepdims=True)
    var = mean_sq - mean * mean
    xn = (x - mean) * jax.lax.rsqrt(var + eps) * g_ref[...] + bta_ref[...]

    # --- MLP: Linear -> ReLU -> Linear -> ReLU -> Linear ---
    # Weights are resident in the MXU operand dtype (bf16 by default); cast the
    # activations to match. Accumulation is always f32.
    mm_dtype = w0_ref.dtype
    h = jnp.dot(xn.astype(mm_dtype), w0_ref[...],
                preferred_element_type=jnp.float32) + b0_ref[...]
    h = jnp.maximum(h, 0.0)
    h = jnp.dot(h.astype(mm_dtype), w1_ref[...],
                preferred_element_type=jnp.float32) + b1_ref[...]
    h = jnp.maximum(h, 0.0)
    logits = jnp.dot(h.astype(mm_dtype), w2_ref[...],
                     preferred_element_type=jnp.float32) + b2_ref[...]

    o_ref[...] = logits.astype(o_ref.dtype)


def prepare_plddt_params(gamma, beta, w0, b0, w1, b1, w2, b2,
                         *, mm_dtype=jnp.bfloat16):
    """One-time parameter prep (hoisted out of the per-call path).

    Reshapes 1-D params to (1, C) rows and casts matmul weights to the MXU
    operand dtype. Call once and reuse the returned tuple for every forward.
    """
    c_s = gamma.shape[0]
    nc = w0.shape[1]
    n_bins = w2.shape[1]
    return (
        gamma.reshape(1, c_s).astype(jnp.float32),
        beta.reshape(1, c_s).astype(jnp.float32),
        w0.astype(mm_dtype),
        b0.reshape(1, nc).astype(jnp.float32),
        w1.astype(mm_dtype),
        b1.reshape(1, nc).astype(jnp.float32),
        w2.astype(mm_dtype),
        b2.reshape(1, n_bins).astype(jnp.float32),
    )


def predicted_lddt_head(single, params, *, tile_m=512, eps=1e-5,
                        out_dtype=jnp.float32):
    """single: [N_res, c_s] (f32 or bf16); params from prepare_plddt_params.

    Returns {'logits': [N_res, num_bins]} in `out_dtype` (pass bf16 if the
    consumer tolerates it to halve the output HBM write).
    """
    n_res, c_s = single.shape
    gamma2, beta2, w0, b0r, w1, b1r, w2, b2r = params
    nc = w0.shape[1]
    n_bins = w2.shape[1]

    # Row tiling: rows stay a multiple of 8; cap at 512 (throughput plateaus,
    # keeps v5e's 16 MiB scoped VMEM happy) and at ~half of N_res so the grid
    # has >=2 steps (both v7x TensorCores used for short sequences).
    half = _round_up(pl.cdiv(n_res, 2), 8)
    tile_m = max(8, min(_round_up(tile_m, 8), 512, half))
    grid = (pl.cdiv(n_res, tile_m),)

    const = lambda i: (0, 0)  # resident params: same block every step -> DMA'd once

    logits = pl.pallas_call(
        functools.partial(_plddt_kernel, eps=eps),
        out_shape=jax.ShapeDtypeStruct((n_res, n_bins), out_dtype),
        grid_spec=pltpu.PrefetchScalarGridSpec(
            num_scalar_prefetch=0,
            grid=grid,
            in_specs=[
                pl.BlockSpec((tile_m, c_s), lambda i: (i, 0)),  # x row tile
                pl.BlockSpec((1, c_s), const),                  # layernorm gamma
                pl.BlockSpec((1, c_s), const),                  # layernorm beta
                pl.BlockSpec((c_s, nc), const),                 # W0 (bf16 resident)
                pl.BlockSpec((1, nc), const),                   # b0
                pl.BlockSpec((nc, nc), const),                  # W1 (bf16 resident)
                pl.BlockSpec((1, nc), const),                   # b1
                pl.BlockSpec((nc, n_bins), const),              # W2 (bf16 resident)
                pl.BlockSpec((1, n_bins), const),               # b2
            ],
            out_specs=pl.BlockSpec((tile_m, n_bins), lambda i: (i, 0)),
        ),
        compiler_params=pltpu.CompilerParams(
            dimension_semantics=("parallel",),
        ),
    )(single, gamma2, beta2, w0, b0r, w1, b1r, w2, b2r)

    return {"logits": logits}


if __name__ == "__main__":
    # Small shapes consistent with the module's forward:
    #   N_res=100 (not a tile multiple -> exercises the ragged last block),
    #   c_s=128, num_channels=64, num_bins=50.
    N_RES, C_S, N_CH, N_BINS = 100, 128, 64, 50

    key = jax.random.PRNGKey(0)
    ks = jax.random.split(key, 6)

    single = jax.random.normal(ks[0], (N_RES, C_S), dtype=jnp.float32)

    # Deterministic parameter init (random path so the output is non-trivial;
    # the module's zero_init default would give all-zero logits).
    gamma = jnp.ones((C_S,), jnp.float32)
    beta = jnp.zeros((C_S,), jnp.float32)
    w0 = jax.random.normal(ks[1], (C_S, N_CH), jnp.float32) / jnp.sqrt(jnp.float32(C_S))
    b0 = jax.random.normal(ks[2], (N_CH,), jnp.float32) * 0.02
    w1 = jax.random.normal(ks[3], (N_CH, N_CH), jnp.float32) / jnp.sqrt(jnp.float32(N_CH))
    b1 = jax.random.normal(ks[4], (N_CH,), jnp.float32) * 0.02
    w2 = jax.random.normal(ks[5], (N_CH, N_BINS), jnp.float32) / jnp.sqrt(jnp.float32(N_CH))
    b2 = jnp.zeros((N_BINS,), jnp.float32)

    # One-time parameter prep (bf16 matmul weights, 2-D biases/gamma/beta).
    params = prepare_plddt_params(gamma, beta, w0, b0, w1, b1, w2, b2,
                                  mm_dtype=jnp.bfloat16)

    out = predicted_lddt_head(single, params)
    logits = jax.block_until_ready(out["logits"])

    # Pure-JAX reference with matching bf16 matmul operands / f32 accumulation.
    mean = single.mean(-1, keepdims=True)
    var = ((single - mean) ** 2).mean(-1, keepdims=True)
    xn = (single - mean) * jax.lax.rsqrt(var + 1e-5) * gamma[None, :] + beta[None, :]
    bf = jnp.bfloat16
    h = jax.nn.relu(jnp.dot(xn.astype(bf), w0.astype(bf),
                            preferred_element_type=jnp.float32) + b0[None, :])
    h = jax.nn.relu(jnp.dot(h.astype(bf), w1.astype(bf),
                            preferred_element_type=jnp.float32) + b1[None, :])
    ref = jnp.dot(h.astype(bf), w2.astype(bf),
                  preferred_element_type=jnp.float32) + b2[None, :]

    assert logits.shape == (N_RES, N_BINS)
    assert bool(jnp.all(jnp.isfinite(logits)))
    assert jnp.allclose(logits, ref, atol=5e-3, rtol=5e-3)

    print("KERNEL_OK")
</pallas_src>

<mosaic_0001>
module attributes {stable_mosaic.version = 11 : i64} {
  func.func @_plddt_kernel(%arg0: i32, %arg1: memref<56x128xf32, #tpu.memory_space<vmem>>, %arg2: memref<1x128xf32, #tpu.memory_space<vmem>>, %arg3: memref<1x128xf32, #tpu.memory_space<vmem>>, %arg4: memref<128x64xbf16, #tpu.memory_space<vmem>>, %arg5: memref<1x64xf32, #tpu.memory_space<vmem>>, %arg6: memref<64x64xbf16, #tpu.memory_space<vmem>>, %arg7: memref<1x64xf32, #tpu.memory_space<vmem>>, %arg8: memref<64x50xbf16, #tpu.memory_space<vmem>>, %arg9: memref<1x50xf32, #tpu.memory_space<vmem>>, %arg10: memref<56x50xf32, #tpu.memory_space<vmem>>) attributes {dimension_semantics = [#tpu.dimension_semantics<parallel>], iteration_bounds = array<i64: 2>, scalar_prefetch = 0 : i64, scratch_operands = 0 : i64, tpu.core_type = #tpu.core_type<tc>, window_params = [{transform_indices = @transform_0, window_bounds = array<i64: 56, 128>}, {pipeline_mode = #tpu.pipeline_mode<synchronous>, transform_indices = @transform_1, window_bounds = array<i64: 1, 128>}, {pipeline_mode = #tpu.pipeline_mode<synchronous>, transform_indices = @transform_2, window_bounds = array<i64: 1, 128>}, {pipeline_mode = #tpu.pipeline_mode<synchronous>, transform_indices = @transform_3, window_bounds = array<i64: 128, 64>}, {pipeline_mode = #tpu.pipeline_mode<synchronous>, transform_indices = @transform_4, window_bounds = array<i64: 1, 64>}, {pipeline_mode = #tpu.pipeline_mode<synchronous>, transform_indices = @transform_5, window_bounds = array<i64: 64, 64>}, {pipeline_mode = #tpu.pipeline_mode<synchronous>, transform_indices = @transform_6, window_bounds = array<i64: 1, 64>}, {pipeline_mode = #tpu.pipeline_mode<synchronous>, transform_indices = @transform_7, window_bounds = array<i64: 64, 50>}, {pipeline_mode = #tpu.pipeline_mode<synchronous>, transform_indices = @transform_8, window_bounds = array<i64: 1, 50>}, {transform_indices = @transform_9, window_bounds = array<i64: 56, 50>}]} {
    %c0 = arith.constant 0 : index
    %c0_0 = arith.constant 0 : index
    %0 = vector.load %arg1[%c0, %c0_0] : memref<56x128xf32, #tpu.memory_space<vmem>>, vector<56x128xf32>
    %cst = arith.constant dense<0.000000e+00> : vector<56xf32>
    %1 = vector.multi_reduction <add>, %0, %cst [1] : vector<56x128xf32> to vector<56xf32>
    %2 = vector.shape_cast %1 : vector<56xf32> to vector<56x1xf32>
    %cst_1 = arith.constant 1.280000e+02 : f32
    %3 = vector.broadcast %cst_1 : f32 to vector<56x1xf32>
    %4 = arith.divf %2, %3 : vector<56x1xf32>
    %5 = arith.mulf %0, %0 : vector<56x128xf32>
    %cst_2 = arith.constant dense<0.000000e+00> : vector<56xf32>
    %6 = vector.multi_reduction <add>, %5, %cst_2 [1] : vector<56x128xf32> to vector<56xf32>
    %7 = vector.shape_cast %6 : vector<56xf32> to vector<56x1xf32>
    %cst_3 = arith.constant 1.280000e+02 : f32
    %8 = vector.broadcast %cst_3 : f32 to vector<56x1xf32>
    %9 = arith.divf %7, %8 : vector<56x1xf32>
    %10 = arith.mulf %4, %4 : vector<56x1xf32>
    %11 = arith.subf %9, %10 : vector<56x1xf32>
    %12 = vector.broadcast %4 : vector<56x1xf32> to vector<56x128xf32>
    %13 = arith.subf %0, %12 : vector<56x128xf32>
    %cst_4 = arith.constant 9.99999974E-6 : f32
    %14 = vector.broadcast %cst_4 : f32 to vector<56x1xf32>
    %15 = arith.addf %11, %14 : vector<56x1xf32>
    %16 = math.rsqrt %15 : vector<56x1xf32>
    %17 = vector.broadcast %16 : vector<56x1xf32> to vector<56x128xf32>
    %18 = arith.mulf %13, %17 : vector<56x128xf32>
    %c0_5 = arith.constant 0 : index
    %c0_6 = arith.constant 0 : index
    %19 = vector.load %arg2[%c0_5, %c0_6] : memref<1x128xf32, #tpu.memory_space<vmem>>, vector<1x128xf32>
    %20 = vector.broadcast %19 : vector<1x128xf32> to vector<56x128xf32>
    %21 = arith.mulf %18, %20 : vector<56x128xf32>
    %c0_7 = arith.constant 0 : index
    %c0_8 = arith.constant 0 : index
    %22 = vector.load %arg3[%c0_7, %c0_8] : memref<1x128xf32, #tpu.memory_space<vmem>>, vector<1x128xf32>
    %23 = vector.broadcast %22 : vector<1x128xf32> to vector<56x128xf32>
    %24 = arith.addf %21, %23 : vector<56x128xf32>
    %25 = arith.truncf %24 : vector<56x128xf32> to vector<56x128xbf16>
    %c0_9 = arith.constant 0 : index
    %c0_10 = arith.constant 0 : index
    %26 = vector.load %arg4[%c0_9, %c0_10] : memref<128x64xbf16, #tpu.memory_space<vmem>>, vector<128x64xbf16>
    %cst_11 = arith.constant dense<0.000000e+00> : vector<56x64xf32>
    %27 = tpu.matmul %25, %26, %cst_11 {dimension_numbers = #tpu.dot_dimension_numbers<[1], [0], [0], [1], [0, 0, 1, 1], [], []>} : vector<56x128xbf16>, vector<128x64xbf16>, vector<56x64xf32> -> vector<56x64xf32>
    %c0_12 = arith.constant 0 : index
    %c0_13 = arith.constant 0 : index
    %28 = vector.load %arg5[%c0_12, %c0_13] : memref<1x64xf32, #tpu.memory_space<vmem>>, vector<1x64xf32>
    %29 = vector.broadcast %28 : vector<1x64xf32> to vector<56x64xf32>
    %30 = arith.addf %27, %29 : vector<56x64xf32>
    %cst_14 = arith.constant 0.000000e+00 : f32
    %31 = vector.broadcast %cst_14 : f32 to vector<56x64xf32>
    %32 = arith.maximumf %30, %31 : vector<56x64xf32>
    %33 = arith.truncf %32 : vector<56x64xf32> to vector<56x64xbf16>
    %c0_15 = arith.constant 0 : index
    %c0_16 = arith.constant 0 : index
    %34 = vector.load %arg6[%c0_15, %c0_16] : memref<64x64xbf16, #tpu.memory_space<vmem>>, vector<64x64xbf16>
    %cst_17 = arith.constant dense<0.000000e+00> : vector<56x64xf32>
    %35 = tpu.matmul %33, %34, %cst_17 {dimension_numbers = #tpu.dot_dimension_numbers<[1], [0], [0], [1], [0, 0, 1, 1], [], []>} : vector<56x64xbf16>, vector<64x64xbf16>, vector<56x64xf32> -> vector<56x64xf32>
    %c0_18 = arith.constant 0 : index
    %c0_19 = arith.constant 0 : index
    %36 = vector.load %arg7[%c0_18, %c0_19] : memref<1x64xf32, #tpu.memory_space<vmem>>, vector<1x64xf32>
    %37 = vector.broadcast %36 : vector<1x64xf32> to vector<56x64xf32>
    %38 = arith.addf %35, %37 : vector<56x64xf32>
    %cst_20 = arith.constant 0.000000e+00 : f32
    %39 = vector.broadcast %cst_20 : f32 to vector<56x64xf32>
    %40 = arith.maximumf %38, %39 : vector<56x64xf32>
    %41 = arith.truncf %40 : vector<56x64xf32> to vector<56x64xbf16>
    %c0_21 = arith.constant 0 : index
    %c0_22 = arith.constant 0 : index
    %42 = vector.load %arg8[%c0_21, %c0_22] : memref<64x50xbf16, #tpu.memory_space<vmem>>, vector<64x50xbf16>
    %cst_23 = arith.constant dense<0.000000e+00> : vector<56x50xf32>
    %43 = tpu.matmul %41, %42, %cst_23 {dimension_numbers = #tpu.dot_dimension_numbers<[1], [0], [0], [1], [0, 0, 1, 1], [], []>} : vector<56x64xbf16>, vector<64x50xbf16>, vector<56x50xf32> -> vector<56x50xf32>
    %c0_24 = arith.constant 0 : index
    %c0_25 = arith.constant 0 : index
    %44 = vector.load %arg9[%c0_24, %c0_25] : memref<1x50xf32, #tpu.memory_space<vmem>>, vector<1x50xf32>
    %45 = vector.broadcast %44 : vector<1x50xf32> to vector<56x50xf32>
    %46 = arith.addf %43, %45 : vector<56x50xf32>
    %c0_26 = arith.constant 0 : index
    %c0_27 = arith.constant 0 : index
    %47 = vector.load %arg10[%c0_26, %c0_27] : memref<56x50xf32, #tpu.memory_space<vmem>>, vector<56x50xf32>
    tpu.vector_store %arg10[%c0_26, %c0_27], %46 {strides = array<i32>} : memref<56x50xf32, #tpu.memory_space<vmem>>, vector<56x50xf32>,
    return
  }
  func.func @transform_0(%arg0: i32) -> (i32, i32) {
    %c0_i32 = arith.constant 0 : i32
    %c0_i32_0 = arith.constant 0 : i32
    return %arg0, %c0_i32 : i32, i32
  }
  func.func @transform_1(%arg0: i32) -> (i32, i32) {
    %c0_i32 = arith.constant 0 : i32
    %c0_i32_0 = arith.constant 0 : i32
    %c0_i32_1 = arith.constant 0 : i32
    return %c0_i32, %c0_i32_0 : i32, i32
  }
  func.func @transform_2(%arg0: i32) -> (i32, i32) {
    %c0_i32 = arith.constant 0 : i32
    %c0_i32_0 = arith.constant 0 : i32
    %c0_i32_1 = arith.constant 0 : i32
    return %c0_i32, %c0_i32_0 : i32, i32
  }
  func.func @transform_3(%arg0: i32) -> (i32, i32) {
    %c0_i32 = arith.constant 0 : i32
    %c0_i32_0 = arith.constant 0 : i32
    %c0_i32_1 = arith.constant 0 : i32
    return %c0_i32, %c0_i32_0 : i32, i32
  }
  func.func @transform_4(%arg0: i32) -> (i32, i32) {
    %c0_i32 = arith.constant 0 : i32
    %c0_i32_0 = arith.constant 0 : i32
    %c0_i32_1 = arith.constant 0 : i32
    return %c0_i32, %c0_i32_0 : i32, i32
  }
  func.func @transform_5(%arg0: i32) -> (i32, i32) {
    %c0_i32 = arith.constant 0 : i32
    %c0_i32_0 = arith.constant 0 : i32
    %c0_i32_1 = arith.constant 0 : i32
    return %c0_i32, %c0_i32_0 : i32, i32
  }
  func.func @transform_6(%arg0: i32) -> (i32, i32) {
    %c0_i32 = arith.constant 0 : i32
    %c0_i32_0 = arith.constant 0 : i32
    %c0_i32_1 = arith.constant 0 : i32
    return %c0_i32, %c0_i32_0 : i32, i32
  }
  func.func @transform_7(%arg0: i32) -> (i32, i32) {
    %c0_i32 = arith.constant 0 : i32
    %c0_i32_0 = arith.constant 0 : i32
    %c0_i32_1 = arith.constant 0 : i32
    return %c0_i32, %c0_i32_0 : i32, i32
  }
  func.func @transform_8(%arg0: i32) -> (i32, i32) {
    %c0_i32 = arith.constant 0 : i32
    %c0_i32_0 = arith.constant 0 : i32
    %c0_i32_1 = arith.constant 0 : i32
    return %c0_i32, %c0_i32_0 : i32, i32
  }
  func.func @transform_9(%arg0: i32) -> (i32, i32) {
    %c0_i32 = arith.constant 0 : i32
    %c0_i32_0 = arith.constant 0 : i32
    return %arg0, %c0_i32 : i32, i32
  }
}

</mosaic_0001>

<llo_original>
// kernel: tpu_custom_call.1
$region0: #{tpu_custom_call.1}
  #allocation0 [shape = 'u32[]', space=smem, size = 0x4, offset = 0x4, fixed_abs, tag = 'smem constant byte address 0x4 - core index']
  #allocation1 [shape = 'u32[144,128]{1,0:T(1,128)}', space=vmem, size = 0x12000, scoped, tag = 'internal scratch']
  %s0 = inlined_call_operand.vmem [shape: f32[100,128], index: 0, kind: input, shape index: {}]
  %s1 = inlined_call_operand.vmem [shape: f32[1,128], index: 1, kind: input, shape index: {}]
  %s2 = inlined_call_operand.vmem [shape: f32[1,128], index: 2, kind: input, shape index: {}]
  %s3 = inlined_call_operand.vmem [shape: bf16[128,64], index: 3, kind: input, shape index: {}]
  %s4 = inlined_call_operand.vmem [shape: f32[1,64], index: 4, kind: input, shape index: {}]
  %s5 = inlined_call_operand.vmem [shape: bf16[64,64], index: 5, kind: input, shape index: {}]
  %s6 = inlined_call_operand.vmem [shape: f32[1,64], index: 6, kind: input, shape index: {}]
  %s7 = inlined_call_operand.vmem [shape: bf16[64,50], index: 7, kind: input, shape index: {}]
  %s8 = inlined_call_operand.vmem [shape: f32[1,50], index: 8, kind: input, shape index: {}]
  %s9 = inlined_call_operand.vmem [shape: f32[100,50], index: 9, kind: output, shape index: {}]
  %s10 = sld [smem:[#allocation0]]
  $region117: #{tpu_custom_call.1} parent=0
    _
  %s12 = ssub.s32 1, %s10
  %s13 = scalar_select 0, %s12, %s10
  $region1: #{tpu_custom_call.1} parent=0
    #allocation2 [shape = 'u8[57344]{0}', space=vmem, size = 0xe000, scoped, tag = 'output window, operand 0']
    loop: start=0, step=1, limit=4
    $region2: #{tpu_custom_call.1} parent=1 // loop_pre_header
      _
    $region3: #{tpu_custom_call.1} parent=1 // loop_header
      %s15 = sphi 0, %s19
      %p16 = scmp.ge.s32.totalorder %s15, 4
      %s25 = sphi 0, %s27
      %s28 = sphi 0, %s25
      %s29 = sphi 0, %s28
      %s45 = sphi 0, %s29
      %s49 = sphi 0, %s49
      %s51 = sphi 0, %s49
      %s52 = sphi 0, %s51
      %s66 = sphi 0, %s52
      %s70 = sphi 0, %s70
      %s72 = sphi 0, %s70
      %s73 = sphi 0, %s72
      %s87 = sphi 0, %s73
      %s91 = sphi 0, %s91
      %s93 = sphi 0, %s91
      %s94 = sphi 0, %s93
      %s108 = sphi 0, %s94
      %s112 = sphi 0, %s112
      %s114 = sphi 0, %s112
      %s115 = sphi 0, %s114
      %s129 = sphi 0, %s115
      %s133 = sphi 0, %s133
      %s135 = sphi 0, %s133
      %s136 = sphi 0, %s135
      %s150 = sphi 0, %s136
      %s154 = sphi 0, %s154
      %s156 = sphi 0, %s154
      %s157 = sphi 0, %s156
      %s171 = sphi 0, %s157
      %s175 = sphi 0, %s175
      %s177 = sphi 0, %s175
      %s178 = sphi 0, %s177
      %s192 = sphi 0, %s178
      %s196 = sphi 0, %s196
      %s198 = sphi 0, %s196
      %s199 = sphi 0, %s198
      %s213 = sphi 0, %s199
      %s219 = sphi 0, %s221
      %s222 = sphi 0, %s219
      %s223 = sphi 0, %s222
      %s239 = sphi 0, %s223
    $region4: #{tpu_custom_call.1} parent=1 // loop_header_branch
      %18 = sbr.rel (%p16) target = $region8
    $region5: #{tpu_custom_call.1} parent=1 // loop_body
      %s20 = ssub.s32 %s15, 1
      %s21 = ssub.s32 %s15, 2
      %s22 = sadd.s32 %s15, 1
      %s23 = ssub.s32 %s15, %s22
      %p24 = scmp.eq.s32.totalorder %s23, 0
      %s26 = sadd.s32 %s25, 1
      %s27 = scalar_select %p24, %s25, %s26
      %p30 = pneg %p24
      %p31 = scmp.eq.s32.totalorder %s15, 1
      %p32 = por %p30, %p31
      %p33 = scmp.ne.s32.totalorder %s25, %s28
      %p34 = scmp.eq.s32.totalorder %s15, 0
      %p35 = por %p33, %p34
      %p36 = scmp.ne.s32.totalorder %s25, %s28
      %p37 = scmp.eq.s32.totalorder %s20, 1
      %p38 = por %p36, %p37
      %p39 = scmp.ne.s32.totalorder %s28, %s29
      %p40 = scmp.eq.s32.totalorder %s20, 0
      %p41 = por %p39, %p40
      %p42 = scmp.ne.s32.totalorder %s28, %s29
      %p43 = scmp.eq.s32.totalorder %s21, 1
      %p44 = por %p42, %p43
      %p46 = scmp.ne.s32.totalorder %s29, %s45
      %p47 = scmp.eq.s32.totalorder %s21, 0
      %p48 = por %p46, %p47
      %s50 = sadd.s32 %s49, 1
      %p53 = scmp.eq.s32.totalorder %s15, 1
      %p54 = scmp.ne.s32.totalorder %s49, %s51
      %p55 = scmp.eq.s32.totalorder %s15, 0
      %p56 = por %p54, %p55
      %p57 = scmp.ne.s32.totalorder %s49, %s51
      %p58 = scmp.eq.s32.totalorder %s20, 1
      %p59 = por %p57, %p58
      %p60 = scmp.ne.s32.totalorder %s51, %s52
      %p61 = scmp.eq.s32.totalorder %s20, 0
      %p62 = por %p60, %p61
      %p63 = scmp.ne.s32.totalorder %s51, %s52
      %p64 = scmp.eq.s32.totalorder %s21, 1
      %p65 = por %p63, %p64
      %p67 = scmp.ne.s32.totalorder %s52, %s66
      %p68 = scmp.eq.s32.totalorder %s21, 0
      %p69 = por %p67, %p68
      %s71 = sadd.s32 %s70, 1
      %p74 = scmp.eq.s32.totalorder %s15, 1
      %p75 = scmp.ne.s32.totalorder %s70, %s72
      %p76 = scmp.eq.s32.totalorder %s15, 0
      %p77 = por %p75, %p76
      %p78 = scmp.ne.s32.totalorder %s70, %s72
      %p79 = scmp.eq.s32.totalorder %s20, 1
      %p80 = por %p78, %p79
      %p81 = scmp.ne.s32.totalorder %s72, %s73
      %p82 = scmp.eq.s32.totalorder %s20, 0
      %p83 = por %p81, %p82
      %p84 = scmp.ne.s32.totalorder %s72, %s73
      %p85 = scmp.eq.s32.totalorder %s21, 1
      %p86 = por %p84, %p85
      %p88 = scmp.ne.s32.totalorder %s73, %s87
      %p89 = scmp.eq.s32.totalorder %s21, 0
      %p90 = por %p88, %p89
      %s92 = sadd.s32 %s91, 1
      %p95 = scmp.eq.s32.totalorder %s15, 1
      %p96 = scmp.ne.s32.totalorder %s91, %s93
      %p97 = scmp.eq.s32.totalorder %s15, 0
      %p98 = por %p96, %p97
      %p99 = scmp.ne.s32.totalorder %s91, %s93
      %p100 = scmp.eq.s32.totalorder %s20, 1
      %p101 = por %p99, %p100
      %p102 = scmp.ne.s32.totalorder %s93, %s94
      %p103 = scmp.eq.s32.totalorder %s20, 0
      %p104 = por %p102, %p103
      %p105 = scmp.ne.s32.totalorder %s93, %s94
      %p106 = scmp.eq.s32.totalorder %s21, 1
      %p107 = por %p105, %p106
      %p109 = scmp.ne.s32.totalorder %s94, %s108
      %p110 = scmp.eq.s32.totalorder %s21, 0
      %p111 = por %p109, %p110
      %s113 = sadd.s32 %s112, 1
      %p116 = scmp.eq.s32.totalorder %s15, 1
      %p117 = scmp.ne.s32.totalorder %s112, %s114
      %p118 = scmp.eq.s32.totalorder %s15, 0
      %p119 = por %p117, %p118
      %p120 = scmp.ne.s32.totalorder %s112, %s114
      %p121 = scmp.eq.s32.totalorder %s20, 1
      %p122 = por %p120, %p121
      %p123 = scmp.ne.s32.totalorder %s114, %s115
      %p124 = scmp.eq.s32.totalorder %s20, 0
      %p125 = por %p123, %p124
      %p126 = scmp.ne.s32.totalorder %s114, %s115
      %p127 = scmp.eq.s32.totalorder %s21, 1
      %p128 = por %p126, %p127
      %p130 = scmp.ne.s32.totalorder %s115, %s129
      %p131 = scmp.eq.s32.totalorder %s21, 0
      %p132 = por %p130, %p131
      %s134 = sadd.s32 %s133, 1
      %p137 = scmp.eq.s32.totalorder %s15, 1
      %p138 = scmp.ne.s32.totalorder %s133, %s135
      %p139 = scmp.eq.s32.totalorder %s15, 0
      %p140 = por %p138, %p139
      %p141 = scmp.ne.s32.totalorder %s133, %s135
      %p142 = scmp.eq.s32.totalorder %s20, 1
      %p143 = por %p141, %p142
      %p144 = scmp.ne.s32.totalorder %s135, %s136
      %p145 = scmp.eq.s32.totalorder %s20, 0
      %p146 = por %p144, %p145
      %p147 = scmp.ne.s32.totalorder %s135, %s136
      %p148 = scmp.eq.s32.totalorder %s21, 1
      %p149 = por %p147, %p148
      %p151 = scmp.ne.s32.totalorder %s136, %s150
      %p152 = scmp.eq.s32.totalorder %s21, 0
      %p153 = por %p151, %p152
      %s155 = sadd.s32 %s154, 1
      %p158 = scmp.eq.s32.totalorder %s15, 1
      %p159 = scmp.ne.s32.totalorder %s154, %s156
      %p160 = scmp.eq.s32.totalorder %s15, 0
      %p161 = por %p159, %p160
      %p162 = scmp.ne.s32.totalorder %s154, %s156
      %p163 = scmp.eq.s32.totalorder %s20, 1
      %p164 = por %p162, %p163
      %p165 = scmp.ne.s32.totalorder %s156, %s157
      %p166 = scmp.eq.s32.totalorder %s20, 0
      %p167 = por %p165, %p166
      %p168 = scmp.ne.s32.totalorder %s156, %s157
      %p169 = scmp.eq.s32.totalorder %s21, 1
      %p170 = por %p168, %p169
      %p172 = scmp.ne.s32.totalorder %s157, %s171
      %p173 = scmp.eq.s32.totalorder %s21, 0
      %p174 = por %p172, %p173
      %s176 = sadd.s32 %s175, 1
      %p179 = scmp.eq.s32.totalorder %s15, 1
      %p180 = scmp.ne.s32.totalorder %s175, %s177
      %p181 = scmp.eq.s32.totalorder %s15, 0
      %p182 = por %p180, %p181
      %p183 = scmp.ne.s32.totalorder %s175, %s177
      %p184 = scmp.eq.s32.totalorder %s20, 1
      %p185 = por %p183, %p184
      %p186 = scmp.ne.s32.totalorder %s177, %s178
      %p187 = scmp.eq.s32.totalorder %s20, 0
      %p188 = por %p186, %p187
      %p189 = scmp.ne.s32.totalorder %s177, %s178
      %p190 = scmp.eq.s32.totalorder %s21, 1
      %p191 = por %p189, %p190
      %p193 = scmp.ne.s32.totalorder %s178, %s192
      %p194 = scmp.eq.s32.totalorder %s21, 0
      %p195 = por %p193, %p194
      %s197 = sadd.s32 %s196, 1
      %p200 = scmp.eq.s32.totalorder %s15, 1
      %p201 = scmp.ne.s32.totalorder %s196, %s198
      %p202 = scmp.eq.s32.totalorder %s15, 0
      %p203 = por %p201, %p202
      %p204 = scmp.ne.s32.totalorder %s196, %s198
      %p205 = scmp.eq.s32.totalorder %s20, 1
      %p206 = por %p204, %p205
      %p207 = scmp.ne.s32.totalorder %s198, %s199
      %p208 = scmp.eq.s32.totalorder %s20, 0
      %p209 = por %p207, %p208
      %p210 = scmp.ne.s32.totalorder %s198, %s199
      %p211 = scmp.eq.s32.totalorder %s21, 1
      %p212 = por %p210, %p211
      %p214 = scmp.ne.s32.totalorder %s199, %s213
      %p215 = scmp.eq.s32.totalorder %s21, 0
      %p216 = por %p214, %p215
      %s217 = ssub.s32 %s15, %s22
      %p218 = scmp.eq.s32.totalorder %s217, 0
      %s220 = sadd.s32 %s219, 1
      %s221 = scalar_select %p218, %s219, %s220
      %p224 = pneg %p218
      %p225 = scmp.eq.s32.totalorder %s15, 1
      %p226 = por %p224, %p225
      %p227 = scmp.ne.s32.totalorder %s219, %s222
      %p228 = scmp.eq.s32.totalorder %s15, 0
      %p229 = por %p227, %p228
      %p230 = scmp.ne.s32.totalorder %s219, %s222
      %p231 = scmp.eq.s32.totalorder %s20, 1
      %p232 = por %p230, %p231
      %p233 = scmp.ne.s32.totalorder %s222, %s223
      %p234 = scmp.eq.s32.totalorder %s20, 0
      %p235 = por %p233, %p234
      %p236 = scmp.ne.s32.totalorder %s222, %s223
      %p237 = scmp.eq.s32.totalorder %s21, 1
      %p238 = por %p236, %p237
      %p240 = scmp.ne.s32.totalorder %s223, %s239
      %p241 = scmp.eq.s32.totalorder %s21, 0
      %p242 = por %p240, %p241
      %p243 = scmp.le.s32.totalorder 1, %s15
      %p244 = scmp.lt.s32.totalorder %s15, 3
      %p245 = pnand %p243, %p244
      %p246 = pneg %p245
      // Predicated region
      $region9: #{tpu_custom_call.1} parent=5 // pred_check
        _
      $region10: #{tpu_custom_call.1} parent=5 // pred_check_branch
        %248 = sbr.rel (%p245) target = $region12
      $region11: #{tpu_custom_call.1} parent=5 // pred_region
        %s249 = ssub.s32 %s15, 1
        // Predicated region
        $region13: #{tpu_custom_call.1} parent=11 // pred_check
          %p250 = pneg %p62
        $region14: #{tpu_custom_call.1} parent=11 // pred_check_branch
          %252 = sbr.rel (%p250) target = $region16
        $region15: #{tpu_custom_call.1} parent=11 // pred_region
          _
        $region16: #{tpu_custom_call.1} parent=11 // pred_fallthru
          _
        // Predicated region
        $region17: #{tpu_custom_call.1} parent=11 // pred_check
          %p253 = pneg %p83
        $region18: #{tpu_custom_call.1} parent=11 // pred_check_branch
          %255 = sbr.rel (%p253) target = $region20
        $region19: #{tpu_custom_call.1} parent=11 // pred_region
          _
        $region20: #{tpu_custom_call.1} parent=11 // pred_fallthru
          _
        // Predicated region
        $region21: #{tpu_custom_call.1} parent=11 // pred_check
          %p256 = pneg %p104
        $region22: #{tpu_custom_call.1} parent=11 // pred_check_branch
          %258 = sbr.rel (%p256) target = $region24
        $region23: #{tpu_custom_call.1} parent=11 // pred_region
          _
        $region24: #{tpu_custom_call.1} parent=11 // pred_fallthru
          _
        // Predicated region
        $region25: #{tpu_custom_call.1} parent=11 // pred_check
          %p259 = pneg %p125
        $region26: #{tpu_custom_call.1} parent=11 // pred_check_branch
          %261 = sbr.rel (%p259) target = $region28
        $region27: #{tpu_custom_call.1} parent=11 // pred_region
          _
        $region28: #{tpu_custom_call.1} parent=11 // pred_fallthru
          _
        // Predicated region
        $region29: #{tpu_custom_call.1} parent=11 // pred_check
          %p262 = pneg %p146
        $region30: #{tpu_custom_call.1} parent=11 // pred_check_branch
          %264 = sbr.rel (%p262) target = $region32
        $region31: #{tpu_custom_call.1} parent=11 // pred_region
          _
        $region32: #{tpu_custom_call.1} parent=11 // pred_fallthru
          _
        // Predicated region
        $region33: #{tpu_custom_call.1} parent=11 // pred_check
          %p265 = pneg %p167
        $region34: #{tpu_custom_call.1} parent=11 // pred_check_branch
          %267 = sbr.rel (%p265) target = $region36
        $region35: #{tpu_custom_call.1} parent=11 // pred_region
          _
        $region36: #{tpu_custom_call.1} parent=11 // pred_fallthru
          _
        // Predicated region
        $region37: #{tpu_custom_call.1} parent=11 // pred_check
          %p268 = pneg %p188
        $region38: #{tpu_custom_call.1} parent=11 // pred_check_branch
          %270 = sbr.rel (%p268) target = $region40
        $region39: #{tpu_custom_call.1} parent=11 // pred_region
          _
        $region40: #{tpu_custom_call.1} parent=11 // pred_fallthru
          _
        // Predicated region
        $region41: #{tpu_custom_call.1} parent=11 // pred_check
          %p271 = pneg %p209
        $region42: #{tpu_custom_call.1} parent=11 // pred_check_branch
          %273 = sbr.rel (%p271) target = $region44
        $region43: #{tpu_custom_call.1} parent=11 // pred_region
          _
        $region44: #{tpu_custom_call.1} parent=11 // pred_fallthru
          _
      $region12: #{tpu_custom_call.1} parent=5 // pred_fallthru
        _
      %p274 = scmp.lt.s32.totalorder %s15, 2
      // Predicated region
      $region45: #{tpu_custom_call.1} parent=5 // pred_check
        %p275 = pneg %p274
      $region46: #{tpu_custom_call.1} parent=5 // pred_check_branch
        %277 = sbr.rel (%p275) target = $region48
      $region47: #{tpu_custom_call.1} parent=5 // pred_region
        // Predicated region
        $region49: #{tpu_custom_call.1} parent=47 // pred_check
          %p278 = pneg %p35
        $region50: #{tpu_custom_call.1} parent=47 // pred_check_branch
          %280 = sbr.rel (%p278) target = $region52
        $region51: #{tpu_custom_call.1} parent=47 // pred_region
          %s281 = smul.u32 7, %s15
          %s282 = ssub.s32 13, %s281
          %p283 = scmp.lt.s32.totalorder %s282, 7
          %s284 = scalar_select %p283, %s282, 7
          %s285 = smul.u32 128, %s284
          %p286 = scmp.lt.s32.totalorder %s281, 12
          %s287 = scalar_select %p286, %s281, 12
          %s288 = smul.addr %s287, 8
          %s289 = scalar_lea.vmem %s0, %s288
          %s290 = smul.u32 7, %s15
          %s291 = ssub.s32 13, %s290
          %p292 = scmp.lt.s32.totalorder %s291, 7
          %s293 = scalar_select %p292, %s291, 7
          %s294 = smul.u32 128, %s293
        $region52: #{tpu_custom_call.1} parent=47 // pred_fallthru
          _
      $region48: #{tpu_custom_call.1} parent=5 // pred_fallthru
        _
      %p295 = scmp.le.s32.totalorder 1, %s15
      %p296 = scmp.lt.s32.totalorder %s15, 3
      %p297 = pnand %p295, %p296
      %p298 = pneg %p297
      // Predicated region
      $region53: #{tpu_custom_call.1} parent=5 // pred_check
        _
      $region54: #{tpu_custom_call.1} parent=5 // pred_check_branch
        %300 = sbr.rel (%p297) target = $region56
      $region55: #{tpu_custom_call.1} parent=5 // pred_region
        %s301 = ssub.s32 %s15, 1
        %s302 = smul.u32 7, %s20
        %s303 = ssub.s32 13, %s302
        %p304 = scmp.lt.s32.totalorder %s303, 7
        %s305 = scalar_select %p304, %s303, 7
        %s306 = smul.u32 128, %s305
        %p307 = scmp.lt.s32.totalorder %s302, 12
        %s308 = scalar_select %p307, %s302, 12
        %s309 = smul.addr %s308, 8
        %s310 = scalar_lea.vmem %s0, %s309
        %p311 = pneg %p41
        %p312 = pneg %p38
        %p313 = pneg %p62
        %p314 = pneg %p59
        %p315 = pneg %p83
        %p316 = pneg %p80
        %p317 = pneg %p104
        %p318 = pneg %p101
        %p319 = pneg %p125
        %p320 = pneg %p122
        %p321 = pneg %p146
        %p322 = pneg %p143
        %p323 = pneg %p167
        %p324 = pneg %p164
        %p325 = pneg %p188
        %p326 = pneg %p185
        %p327 = pneg %p209
        %p328 = pneg %p206
        %p329 = pneg %p235
        %p330 = pneg %p232
        %s331 = sand.u32 %s222, 1
        %s332 = sand.u32 %s222, 1
        %s333 = smul.addr %s332, 56
        %s334 = scalar_lea.vmem [#allocation2], %s333
        %s335 = smul.u32 7, %s20
        %s336 = ssub.s32 13, %s335
        %p337 = scmp.lt.s32.totalorder %s336, 7
        %s338 = scalar_select %p337, %s336, 7
        %s339 = smul.u32 128, %s338
        %p340 = scmp.lt.s32.totalorder %s335, 12
        %s341 = scalar_select %p340, %s335, 12
        %s342 = smul.addr %s341, 8
        %s343 = scalar_lea.vmem %s0, %s342
        %s344 = smul.u32 7, %s20
        %s345 = ssub.s32 13, %s344
        %p346 = scmp.lt.s32.totalorder %s345, 7
        %s347 = scalar_select %p346, %s345, 7
        %s348 = smul.u32 128, %s347
        %s349 = smul.u32 7, %s20
        %s350 = ssub.s32 13, %s349
        %p351 = scmp.lt.s32.totalorder %s350, 7
        %s352 = scalar_select %p351, %s350, 7
        %s353 = smul.u32 128, %s352
        %v355 = vld [vmem:[%s343] sm:$0xff]
        %v356 = vld [vmem:[%s343 + $0x8] sm:$0xff]
        %v357 = vld [vmem:[%s343 + $0x10] sm:$0xff]
        %v358 = vld [vmem:[%s343 + $0x18] sm:$0xff]
        %v359 = vld [vmem:[%s343 + $0x20] sm:$0xff]
        %v360 = vld [vmem:[%s343 + $0x28] sm:$0xff]
        %v361 = vld [vmem:[%s343 + $0x30] sm:$0xff]
        %362 = vadd.xlane.f32.xlu0 %v355
        %v363 = vpop.xlane.xlu0 %362
        %364 = vadd.xlane.f32.xlu0 %v356
        %v365 = vpop.xlane.xlu0 %364
        %366 = vadd.xlane.f32.xlu0 %v357
        %v367 = vpop.xlane.xlu0 %366
        %368 = vadd.xlane.f32.xlu0 %v358
        %v369 = vpop.xlane.xlu0 %368
        %370 = vadd.xlane.f32.xlu0 %v359
        %v371 = vpop.xlane.xlu0 %370
        %372 = vadd.xlane.f32.xlu0 %v360
        %v373 = vpop.xlane.xlu0 %372
        %374 = vadd.xlane.f32.xlu0 %v361
        %v375 = vpop.xlane.xlu0 %374
        %v376 = vrcp.pop 128.0
        %v377 = vmul.f32 %v363, %v376
        %v378 = vmul.f32 %v365, %v376
        %v379 = vmul.f32 %v367, %v376
        %v380 = vmul.f32 %v369, %v376
        %v381 = vmul.f32 %v371, %v376
        %v382 = vmul.f32 %v373, %v376
        %v383 = vmul.f32 %v375, %v376
        %v384 = vmul.f32 %v355, %v355
        %v385 = vmul.f32 %v356, %v356
        %v386 = vmul.f32 %v357, %v357
        %v387 = vmul.f32 %v358, %v358
        %v388 = vmul.f32 %v359, %v359
        %v389 = vmul.f32 %v360, %v360
        %v390 = vmul.f32 %v361, %v361
        %391 = vadd.xlane.f32.xlu0 %v384
        %v392 = vpop.xlane.xlu0 %391
        %393 = vadd.xlane.f32.xlu0 %v385
        %v394 = vpop.xlane.xlu0 %393
        %395 = vadd.xlane.f32.xlu0 %v386
        %v396 = vpop.xlane.xlu0 %395
        %397 = vadd.xlane.f32.xlu0 %v387
        %v398 = vpop.xlane.xlu0 %397
        %399 = vadd.xlane.f32.xlu0 %v388
        %v400 = vpop.xlane.xlu0 %399
        %401 = vadd.xlane.f32.xlu0 %v389
        %v402 = vpop.xlane.xlu0 %401
        %403 = vadd.xlane.f32.xlu0 %v390
        %v404 = vpop.xlane.xlu0 %403
        %v405 = vmul.f32 %v392, %v376
        %v406 = vmul.f32 %v394, %v376
        %v407 = vmul.f32 %v396, %v376
        %v408 = vmul.f32 %v398, %v376
        %v409 = vmul.f32 %v400, %v376
        %v410 = vmul.f32 %v402, %v376
        %v411 = vmul.f32 %v404, %v376
        %v412 = vmul.f32 %v377, %v377
        %v413 = vmul.f32 %v378, %v378
        %v414 = vmul.f32 %v379, %v379
        %v415 = vmul.f32 %v380, %v380
        %v416 = vmul.f32 %v381, %v381
        %v417 = vmul.f32 %v382, %v382
        %v418 = vmul.f32 %v383, %v383
        %v419 = vsub.f32 %v405, %v412
        %v420 = vsub.f32 %v406, %v413
        %v421 = vsub.f32 %v407, %v414
        %v422 = vsub.f32 %v408, %v415
        %v423 = vsub.f32 %v409, %v416
        %v424 = vsub.f32 %v410, %v417
        %v425 = vsub.f32 %v411, %v418
        %v426 = vsub.f32 %v355, %v377
        %v427 = vsub.f32 %v356, %v378
        %v428 = vsub.f32 %v357, %v379
        %v429 = vsub.f32 %v358, %v380
        %v430 = vsub.f32 %v359, %v381
        %v431 = vsub.f32 %v360, %v382
        %v432 = vsub.f32 %v361, %v383
        %v433 = vadd.f32 %v419, 1e-05
        %v434 = vadd.f32 %v420, 1e-05
        %v435 = vadd.f32 %v421, 1e-05
        %v436 = vadd.f32 %v422, 1e-05
        %v437 = vadd.f32 %v423, 1e-05
        %v438 = vadd.f32 %v424, 1e-05
        %v439 = vadd.f32 %v425, 1e-05
        %v440 = vrsqrt.pop %v433
        %v441 = vrsqrt.pop %v434
        %v442 = vrsqrt.pop %v435
        %v443 = vrsqrt.pop %v436
        %v444 = vrsqrt.pop %v437
        %v445 = vrsqrt.pop %v438
        %v446 = vrsqrt.pop %v439
        %v447 = vmul.f32 %v426, %v440
        %v448 = vmul.f32 %v427, %v441
        %v449 = vmul.f32 %v428, %v442
        %v450 = vmul.f32 %v429, %v443
        %v451 = vmul.f32 %v430, %v444
        %v452 = vmul.f32 %v431, %v445
        %v453 = vmul.f32 %v432, %v446
        %v454 = vld [vmem:[%s1] sm:$0x1]
        %v456 = vlaneseq
        %v457 = vshrl.u32 %v456, 7
        %v458 = vsub.s32 0, %v457
        %v459 = vrot.slane %v454, %v458
        %v461 = vmul.f32 %v447, %v459
        %v462 = vmul.f32 %v448, %v459
        %v463 = vmul.f32 %v449, %v459
        %v464 = vmul.f32 %v450, %v459
        %v465 = vmul.f32 %v451, %v459
        %v466 = vmul.f32 %v452, %v459
        %v467 = vmul.f32 %v453, %v459
        %v468 = vld [vmem:[%s2] sm:$0x1]
        %v470 = vlaneseq
        %v471 = vshrl.u32 %v470, 7
        %v472 = vsub.s32 0, %v471
        %v473 = vrot.slane %v468, %v472
        %v475 = vadd.f32 %v461, %v473
        %v476 = vadd.f32 %v462, %v473
        %v477 = vadd.f32 %v463, %v473
        %v478 = vadd.f32 %v464, %v473
        %v479 = vadd.f32 %v465, %v473
        %v480 = vadd.f32 %v466, %v473
        %v481 = vadd.f32 %v467, %v473
        %v482 = vpack.c.bf16 %v476, %v475
        %v483 = vpack.c.bf16 %v478, %v477
        %v484 = vpack.c.bf16 %v480, %v479
        %v485 = vpack.c.bf16 %v481, %v481
        %v486 = vld [vmem:[%s3] sm:$0xf]
        %v487 = vld [vmem:[%s3 + $0x4] sm:$0xf]
        %v488 = vld [vmem:[%s3 + $0x8] sm:$0xf]
        %v489 = vld [vmem:[%s3 + $0xc] sm:$0xf]
        %v490 = vld [vmem:[%s3 + $0x10] sm:$0xf]
        %v491 = vld [vmem:[%s3 + $0x14] sm:$0xf]
        %v492 = vld [vmem:[%s3 + $0x18] sm:$0xf]
        %v493 = vld [vmem:[%s3 + $0x1c] sm:$0xf]
        %v494 = vld [vmem:[%s3 + $0x20] sm:$0xf]
        %v495 = vld [vmem:[%s3 + $0x24] sm:$0xf]
        %v496 = vld [vmem:[%s3 + $0x28] sm:$0xf]
        %v497 = vld [vmem:[%s3 + $0x2c] sm:$0xf]
        %v498 = vld [vmem:[%s3 + $0x30] sm:$0xf]
        %v499 = vld [vmem:[%s3 + $0x34] sm:$0xf]
        %v500 = vld [vmem:[%s3 + $0x38] sm:$0xf]
        %v501 = vld [vmem:[%s3 + $0x3c] sm:$0xf]
        %v502 = vld [vmem:[%s4] sm:$0x1]
        %v504 = vlaneseq
        %v505 = vshrl.u32 %v504, 7
        %v506 = vsub.s32 0, %v505
        %v507 = vrot.slane %v502, %v506
        %v525 = vunpack.c.l.b16 %v486
        %v526 = vunpack.c.l.b16 %v487
        %v527 = vunpack.c.l.b16 %v488
        %v528 = vunpack.c.l.b16 %v489
        %v529 = vunpack.c.l.b16 %v490
        %v530 = vunpack.c.l.b16 %v491
        %v531 = vunpack.c.l.b16 %v492
        %v532 = vunpack.c.l.b16 %v493
        %v533 = vunpack.c.l.b16 %v494
        %v534 = vunpack.c.l.b16 %v495
        %v535 = vunpack.c.l.b16 %v496
        %v536 = vunpack.c.l.b16 %v497
        %v537 = vunpack.c.l.b16 %v498
        %v538 = vunpack.c.l.b16 %v499
        %v539 = vunpack.c.l.b16 %v500
        %v540 = vunpack.c.l.b16 %v501
        %v541 = vpack.c.b16 %v526, %v525
        %v542 = vpack.c.b16 %v528, %v527
        %v543 = vpack.c.b16 %v530, %v529
        %v544 = vpack.c.b16 %v532, %v531
        %v545 = vpack.c.b16 %v534, %v533
        %v546 = vpack.c.b16 %v536, %v535
        %v547 = vpack.c.b16 %v538, %v537
        %v548 = vpack.c.b16 %v540, %v539
        %557 = vmatprep.subr.bf16.mxu0 0
        %558 = vmatpush1.bf16.msra.mxu0 %v541
        %559 = vmatprep.subr.bf16.mxu0 0
        %560 = vmatpush1.bf16.msra.mxu0 %v542
        %561 = vmatprep.subr.bf16.mxu0 0
        %562 = vmatpush1.bf16.msra.mxu0 %v543
        %563 = vmatprep.subr.bf16.mxu0 0
        %564 = vmatpush1.bf16.msra.mxu0 %v544
        %565 = vmatprep.subr.bf16.mxu0 0
        %566 = vmatpush1.bf16.msra.mxu0 %v545
        %567 = vmatprep.subr.bf16.mxu0 0
        %568 = vmatpush1.bf16.msra.mxu0 %v546
        %569 = vmatprep.subr.bf16.mxu0 0
        %570 = vmatpush1.bf16.msra.mxu0 %v547
        %571 = vmatprep.subr.bf16.mxu0 0
        %572 = vmatpush1.bf16.msra.mxu0 %v548
        %573 = vmatprep.subr.bf16.mxu0 0
        %574 = vmatpush1.bf16.msra.mxu0 0
        %575 = vmatprep.subr.bf16.mxu0 0
        %576 = vmatpush1.bf16.msra.mxu0 0
        %577 = vmatprep.subr.bf16.mxu0 0
        %578 = vmatpush1.bf16.msra.mxu0 0
        %579 = vmatprep.subr.bf16.mxu0 0
        %580 = vmatpush1.bf16.msra.mxu0 0
        %581 = vmatprep.subr.bf16.mxu0 0
        %582 = vmatpush1.bf16.msra.mxu0 0
        %583 = vmatprep.subr.bf16.mxu0 0
        %584 = vmatpush1.bf16.msra.mxu0 0
        %585 = vmatprep.subr.bf16.mxu0 0
        %586 = vmatpush1.bf16.msra.mxu0 0
        %587 = vmatprep.subr.bf16.mxu0 0
        %588 = vmatpush1.bf16.msra.mxu0 0
        %589 = vmatprep.mubr.bf16.mxu0 0
        %590 = vmatmul.mubr.bf16.gmra.mrb[0].mxu0 %v482
        %v591 = vpop.f32.mrb[0].mxu0
        %v592 = vadd.f32 %v507, %v591
        %v593 = vpop.f32.mrb[0].mxu0
        %v594 = vpop.f32.mrb[0].mxu0
        %v595 = vadd.f32 %v507, %v594
        %v596 = vpop.f32.mrb[0].mxu0
        %597 = vmatprep.mubr.bf16.mxu0 0
        %598 = vmatmul.mubr.bf16.gmra.mrb[0].mxu0 %v483
        %v599 = vpop.f32.mrb[0].mxu0
        %v600 = vadd.f32 %v507, %v599
        %v601 = vpop.f32.mrb[0].mxu0
        %v602 = vpop.f32.mrb[0].mxu0
        %v603 = vadd.f32 %v507, %v602
        %v604 = vpop.f32.mrb[0].mxu0
        %605 = vmatprep.mubr.bf16.mxu0 0
        %606 = vmatmul.mubr.bf16.gmra.mrb[0].mxu0 %v484
        %v607 = vpop.f32.mrb[0].mxu0
        %v608 = vadd.f32 %v507, %v607
        %v609 = vpop.f32.mrb[0].mxu0
        %v610 = vpop.f32.mrb[0].mxu0
        %v611 = vadd.f32 %v507, %v610
        %v612 = vpop.f32.mrb[0].mxu0
        %613 = vmatprep.mubr.bf16.mxu0 0
        %614 = vmatmul.mubr.bf16.gmra.mrb[0].mxu0 %v485
        %v615 = vpop.f32.mrb[0].mxu0
        %v616 = vadd.f32 %v507, %v615
        %v617 = vpop.f32.mrb[0].mxu0
        %v618 = vpop.f32.mrb[0].mxu0
        %v619 = vpop.f32.mrb[0].mxu0
        %620 = vdwg.mxu0
        %v621 = vmax.f32 %v592, 0.0
        %v622 = vmax.f32 %v595, 0.0
        %v623 = vmax.f32 %v600, 0.0
        %v624 = vmax.f32 %v603, 0.0
        %v625 = vmax.f32 %v608, 0.0
        %v626 = vmax.f32 %v611, 0.0
        %v627 = vmax.f32 %v616, 0.0
        %v628 = vpack.c.bf16 %v622, %v621
        %v629 = vpack.c.bf16 %v624, %v623
        %v630 = vpack.c.bf16 %v626, %v625
        %v631 = vpack.c.bf16 %v627, %v627
        %v632 = vld [vmem:[%s5] sm:$0xf]
        %v633 = vld [vmem:[%s5 + $0x4] sm:$0xf]
        %v634 = vld [vmem:[%s5 + $0x8] sm:$0xf]
        %v635 = vld [vmem:[%s5 + $0xc] sm:$0xf]
        %v636 = vld [vmem:[%s5 + $0x10] sm:$0xf]
        %v637 = vld [vmem:[%s5 + $0x14] sm:$0xf]
        %v638 = vld [vmem:[%s5 + $0x18] sm:$0xf]
        %v639 = vld [vmem:[%s5 + $0x1c] sm:$0xf]
        %v640 = vld [vmem:[%s6] sm:$0x1]
        %v642 = vlaneseq
        %v643 = vshrl.u32 %v642, 7
        %v644 = vsub.s32 0, %v643
        %v645 = vrot.slane %v640, %v644
        %v655 = vunpack.c.l.b16 %v632
        %v656 = vunpack.c.l.b16 %v633
        %v657 = vunpack.c.l.b16 %v634
        %v658 = vunpack.c.l.b16 %v635
        %v659 = vunpack.c.l.b16 %v636
        %v660 = vunpack.c.l.b16 %v637
        %v661 = vunpack.c.l.b16 %v638
        %v662 = vunpack.c.l.b16 %v639
        %v663 = vpack.c.b16 %v656, %v655
        %v664 = vpack.c.b16 %v658, %v657
        %v665 = vpack.c.b16 %v660, %v659
        %v666 = vpack.c.b16 %v662, %v661
        %vm671 = vcmask 523264
        %v673 = vsel %vm671, %v628, 0
        %v676 = vsel %vm671, %v629, 0
        %v679 = vsel %vm671, %v630, 0
        %v682 = vsel %vm671, %v631, 0
        %684 = vmatprep.subr.bf16.mxu0 0
        %685 = vmatpush1.bf16.msra.mxu0 %v663
        %686 = vmatprep.subr.bf16.mxu0 0
        %687 = vmatpush1.bf16.msra.mxu0 %v664
        %688 = vmatprep.subr.bf16.mxu0 0
        %689 = vmatpush1.bf16.msra.mxu0 %v665
        %690 = vmatprep.subr.bf16.mxu0 0
        %691 = vmatpush1.bf16.msra.mxu0 %v666
        %692 = vmatprep.subr.bf16.mxu0 0
        %693 = vmatpush1.bf16.msra.mxu0 0
        %694 = vmatprep.subr.bf16.mxu0 0
        %695 = vmatpush1.bf16.msra.mxu0 0
        %696 = vmatprep.subr.bf16.mxu0 0
        %697 = vmatpush1.bf16.msra.mxu0 0
        %698 = vmatprep.subr.bf16.mxu0 0
        %699 = vmatpush1.bf16.msra.mxu0 0
        %700 = vmatprep.subr.bf16.mxu0 0
        %701 = vmatpush1.bf16.msra.mxu0 0
        %702 = vmatprep.subr.bf16.mxu0 0
        %703 = vmatpush1.bf16.msra.mxu0 0
        %704 = vmatprep.subr.bf16.mxu0 0
        %705 = vmatpush1.bf16.msra.mxu0 0
        %706 = vmatprep.subr.bf16.mxu0 0
        %707 = vmatpush1.bf16.msra.mxu0 0
        %708 = vmatprep.subr.bf16.mxu0 0
        %709 = vmatpush1.bf16.msra.mxu0 0
        %710 = vmatprep.subr.bf16.mxu0 0
        %711 = vmatpush1.bf16.msra.mxu0 0
        %712 = vmatprep.subr.bf16.mxu0 0
        %713 = vmatpush1.bf16.msra.mxu0 0
        %714 = vmatprep.subr.bf16.mxu0 0
        %715 = vmatpush1.bf16.msra.mxu0 0
        %716 = vmatprep.mubr.bf16.mxu0 0
        %717 = vmatmul.mubr.bf16.gmra.mrb[0].mxu0 %v673
        %v718 = vpop.f32.mrb[0].mxu0
        %v719 = vadd.f32 %v645, %v718
        %v720 = vpop.f32.mrb[0].mxu0
        %v721 = vpop.f32.mrb[0].mxu0
        %v722 = vadd.f32 %v645, %v721
        %v723 = vpop.f32.mrb[0].mxu0
        %724 = vmatprep.mubr.bf16.mxu0 0
        %725 = vmatmul.mubr.bf16.gmra.mrb[0].mxu0 %v676
        %v726 = vpop.f32.mrb[0].mxu0
        %v727 = vadd.f32 %v645, %v726
        %v728 = vpop.f32.mrb[0].mxu0
        %v729 = vpop.f32.mrb[0].mxu0
        %v730 = vadd.f32 %v645, %v729
        %v731 = vpop.f32.mrb[0].mxu0
        %732 = vmatprep.mubr.bf16.mxu0 0
        %733 = vmatmul.mubr.bf16.gmra.mrb[0].mxu0 %v679
        %v734 = vpop.f32.mrb[0].mxu0
        %v735 = vadd.f32 %v645, %v734
        %v736 = vpop.f32.mrb[0].mxu0
        %v737 = vpop.f32.mrb[0].mxu0
        %v738 = vadd.f32 %v645, %v737
        %v739 = vpop.f32.mrb[0].mxu0
        %740 = vmatprep.mubr.bf16.mxu0 0
        %741 = vmatmul.mubr.bf16.gmra.mrb[0].mxu0 %v682
        %v742 = vpop.f32.mrb[0].mxu0
        %v743 = vadd.f32 %v645, %v742
        %v744 = vpop.f32.mrb[0].mxu0
        %v745 = vpop.f32.mrb[0].mxu0
        %v746 = vpop.f32.mrb[0].mxu0
        %747 = vdwg.mxu0
        %v748 = vmax.f32 %v719, 0.0
        %v749 = vmax.f32 %v722, 0.0
        %v750 = vmax.f32 %v727, 0.0
        %v751 = vmax.f32 %v730, 0.0
        %v752 = vmax.f32 %v735, 0.0
        %v753 = vmax.f32 %v738, 0.0
        %v754 = vmax.f32 %v743, 0.0
        %v755 = vpack.c.bf16 %v749, %v748
        %v756 = vpack.c.bf16 %v751, %v750
        %v757 = vpack.c.bf16 %v753, %v752
        %v758 = vpack.c.bf16 %v754, %v754
        %v759 = vld [vmem:[%s7] sm:$0xf]
        %v760 = vld [vmem:[%s7 + $0x4] sm:$0xf]
        %v761 = vld [vmem:[%s7 + $0x8] sm:$0xf]
        %v762 = vld [vmem:[%s7 + $0xc] sm:$0xf]
        %v763 = vld [vmem:[%s7 + $0x10] sm:$0xf]
        %v764 = vld [vmem:[%s7 + $0x14] sm:$0xf]
        %v765 = vld [vmem:[%s7 + $0x18] sm:$0xf]
        %v766 = vld [vmem:[%s7 + $0x1c] sm:$0xf]
        %v767 = vld [vmem:[%s8] sm:$0x1]
        %v769 = vlaneseq
        %v770 = vshrl.u32 %v769, 7
        %v771 = vsub.s32 0, %v770
        %v772 = vrot.slane %v767, %v771
        %v782 = vunpack.c.l.b16 %v759
        %v783 = vunpack.c.l.b16 %v760
        %v784 = vunpack.c.l.b16 %v761
        %v785 = vunpack.c.l.b16 %v762
        %v786 = vunpack.c.l.b16 %v763
        %v787 = vunpack.c.l.b16 %v764
        %v788 = vunpack.c.l.b16 %v765
        %v789 = vunpack.c.l.b16 %v766
        %v790 = vpack.c.b16 %v783, %v782
        %v791 = vpack.c.b16 %v785, %v784
        %v792 = vpack.c.b16 %v787, %v786
        %v793 = vpack.c.b16 %v789, %v788
        %v799 = vsel %vm671, %v755, 0
        %v802 = vsel %vm671, %v756, 0
        %v805 = vsel %vm671, %v757, 0
        %v808 = vsel %vm671, %v758, 0
        %810 = vmatprep.subr.bf16.mxu0 0
        %811 = vmatpush1.bf16.msra.mxu0 %v790
        %812 = vmatprep.subr.bf16.mxu0 0
        %813 = vmatpush1.bf16.msra.mxu0 %v791
        %814 = vmatprep.subr.bf16.mxu0 0
        %815 = vmatpush1.bf16.msra.mxu0 %v792
        %816 = vmatprep.subr.bf16.mxu0 0
        %817 = vmatpush1.bf16.msra.mxu0 %v793
        %818 = vmatprep.subr.bf16.mxu0 0
        %819 = vmatpush1.bf16.msra.mxu0 0
        %820 = vmatprep.subr.bf16.mxu0 0
        %821 = vmatpush1.bf16.msra.mxu0 0
        %822 = vmatprep.subr.bf16.mxu0 0
        %823 = vmatpush1.bf16.msra.mxu0 0
        %824 = vmatprep.subr.bf16.mxu0 0
        %825 = vmatpush1.bf16.msra.mxu0 0
        %826 = vmatprep.subr.bf16.mxu0 0
        %827 = vmatpush1.bf16.msra.mxu0 0
        %828 = vmatprep.subr.bf16.mxu0 0
        %829 = vmatpush1.bf16.msra.mxu0 0
        %830 = vmatprep.subr.bf16.mxu0 0
        %831 = vmatpush1.bf16.msra.mxu0 0
        %832 = vmatprep.subr.bf16.mxu0 0
        %833 = vmatpush1.bf16.msra.mxu0 0
        %834 = vmatprep.subr.bf16.mxu0 0
        %835 = vmatpush1.bf16.msra.mxu0 0
        %836 = vmatprep.subr.bf16.mxu0 0
        %837 = vmatpush1.bf16.msra.mxu0 0
        %838 = vmatprep.subr.bf16.mxu0 0
        %839 = vmatpush1.bf16.msra.mxu0 0
        %840 = vmatprep.subr.bf16.mxu0 0
        %841 = vmatpush1.bf16.msra.mxu0 0
        %842 = vmatprep.mubr.bf16.mxu0 0
        %843 = vmatmul.mubr.bf16.gmra.mrb[0].mxu0 %v799
        %v844 = vpop.f32.mrb[0].mxu0
        %v845 = vadd.f32 %v772, %v844
        %v846 = vpop.f32.mrb[0].mxu0
        %v847 = vpop.f32.mrb[0].mxu0
        %v848 = vadd.f32 %v772, %v847
        %v849 = vpop.f32.mrb[0].mxu0
        %850 = vmatprep.mubr.bf16.mxu0 0
        %851 = vmatmul.mubr.bf16.gmra.mrb[0].mxu0 %v802
        %v852 = vpop.f32.mrb[0].mxu0
        %v853 = vadd.f32 %v772, %v852
        %v854 = vpop.f32.mrb[0].mxu0
        %v855 = vpop.f32.mrb[0].mxu0
        %v856 = vadd.f32 %v772, %v855
        %v857 = vpop.f32.mrb[0].mxu0
        %858 = vmatprep.mubr.bf16.mxu0 0
        %859 = vmatmul.mubr.bf16.gmra.mrb[0].mxu0 %v805
        %v860 = vpop.f32.mrb[0].mxu0
        %v861 = vadd.f32 %v772, %v860
        %v862 = vpop.f32.mrb[0].mxu0
        %v863 = vpop.f32.mrb[0].mxu0
        %v864 = vadd.f32 %v772, %v863
        %v865 = vpop.f32.mrb[0].mxu0
        %866 = vmatprep.mubr.bf16.mxu0 0
        %867 = vmatmul.mubr.bf16.gmra.mrb[0].mxu0 %v808
        %v868 = vpop.f32.mrb[0].mxu0
        %v869 = vadd.f32 %v772, %v868
        %v870 = vpop.f32.mrb[0].mxu0
        %v871 = vpop.f32.mrb[0].mxu0
        %v872 = vpop.f32.mrb[0].mxu0
        %873 = vdwg.mxu0
        %vm874 = vcmask 408576
        %875 = vst.msk [vmem:[%s334] sm:$0xff] %vm874, %v845
        %876 = vst.msk [vmem:[%s334 + $0x8] sm:$0xff] %vm874, %v848
        %877 = vst.msk [vmem:[%s334 + $0x10] sm:$0xff] %vm874, %v853
        %878 = vst.msk [vmem:[%s334 + $0x18] sm:$0xff] %vm874, %v856
        %879 = vst.msk [vmem:[%s334 + $0x20] sm:$0xff] %vm874, %v861
        %880 = vst.msk [vmem:[%s334 + $0x28] sm:$0xff] %vm874, %v864
        %881 = vst.msk [vmem:[%s334 + $0x30] sm:$0xff] %vm874, %v869
        %s882 = sand.u32 %s222, 1
        %s883 = sand.u32 %s222, 1
        %s884 = smul.addr %s883, 56
        %s885 = scalar_lea.vmem [#allocation2], %s884
        // Predicated region
        $region57: #{tpu_custom_call.1} parent=55 // pred_check
          %p886 = pneg %p232
        $region58: #{tpu_custom_call.1} parent=55 // pred_check_branch
          %888 = sbr.rel (%p886) target = $region60
        $region59: #{tpu_custom_call.1} parent=55 // pred_region
          %s889 = smul.u32 7, %s20
          %s890 = ssub.s32 13, %s889
          %p891 = scmp.lt.s32.totalorder %s890, 7
          %s892 = scalar_select %p891, %s890, 7
          %s893 = smul.u32 128, %s892
          %p894 = scmp.ne.s32.totalorder 0, %s893
          %s895 = smul.addr %s889, 8
          %s896 = scalar_lea.vmem %s9, %s895
          // Predicated region
          $region61: #{tpu_custom_call.1} parent=59 // pred_check
            %p897 = pneg %p894
          $region62: #{tpu_custom_call.1} parent=59 // pred_check_branch
            %899 = sbr.rel (%p897) target = $region64
          $region63: #{tpu_custom_call.1} parent=59 // pred_region
            // Predicated region
            $region65: #{tpu_custom_call.1} parent=63 // pred_check
              _
            $region66: #{tpu_custom_call.1} parent=63 // pred_check_branch
              %901 = sbr.rel (0) target = $region68
            $region67: #{tpu_custom_call.1} parent=63 // pred_region
              // Predicated region
              $region87: #{tpu_custom_call.1} parent=67 // pred_check
                _
              $region88: #{tpu_custom_call.1} parent=67 // pred_check_branch
                %963 = sbr.rel (0) target = $region90
              $region89: #{tpu_custom_call.1} parent=67 // pred_region
                %s964 = sdiv.u32.pop %s892, 7
                %s965 = srem.u32.pop %s892, 7
                // While loop
                $region91: #{tpu_custom_call.1} parent=89 // loop_pre_header
                  _
                $region92: #{tpu_custom_call.1} parent=89 // loop_header
                  %s967 = sphi 0, %s969
                  %p968 = scmp.ge.s32.totalorder %s967, %s964
                  %s972 = sphi 0, %s991
                  %s973 = sphi %s885, %s994
                  %s974 = sphi %s896, %s995
                $region93: #{tpu_custom_call.1} parent=89 // loop_header_branch
                  %971 = sbr.rel (%p968) target = $region97
                $region94: #{tpu_custom_call.1} parent=89 // loop_body
                  %v975 = vld [vmem:[%s973] sm:$0xff]
                  %976 = vst [vmem:[%s974] sm:$0xff] %v975
                  %v977 = vld [vmem:[%s973 + $0x8] sm:$0xff]
                  %978 = vst [vmem:[%s974 + $0x8] sm:$0xff] %v977
                  %v979 = vld [vmem:[%s973 + $0x10] sm:$0xff]
                  %980 = vst [vmem:[%s974 + $0x10] sm:$0xff] %v979
                  %v981 = vld [vmem:[%s973 + $0x18] sm:$0xff]
                  %982 = vst [vmem:[%s974 + $0x18] sm:$0xff] %v981
                  %v983 = vld [vmem:[%s973 + $0x20] sm:$0xff]
                  %984 = vst [vmem:[%s974 + $0x20] sm:$0xff] %v983
                  %v985 = vld [vmem:[%s973 + $0x28] sm:$0xff]
                  %986 = vst [vmem:[%s974 + $0x28] sm:$0xff] %v985
                  %v987 = vld [vmem:[%s973 + $0x30] sm:$0xff]
                  %988 = vst [vmem:[%s974 + $0x30] sm:$0xff] %v987
                  %s989 = sadd.s32 1, %s972
                  %p990 = scmp.ge.s32.totalorder %s989, %s964
                  %s991 = scalar_select %p990, 0, %s989
                  %s992 = smul.u32 %s991, 56
                  %s993 = smul.u32 %s991, 56
                  %s994 = scalar_lea.vmem %s885, %s992 [#allocation2]
                  %s995 = scalar_lea.vmem %s896, %s993
                $region95: #{tpu_custom_call.1} parent=89 // loop_footer
                  %s969 = sadd.s32 %s967, 1
                $region96: #{tpu_custom_call.1} parent=89 // loop_footer_branch
                  %966 = sbr.rel target = $region92
                $region97: #{tpu_custom_call.1} parent=89 // loop_exit
                  _
                %s996 = sdiv.u32.pop %s892, 7
                %s997 = srem.u32.pop %s892, 7
                %s998 = smul.u32 %s996, 7
                %s999 = smul.u32 8, %s998
                %s1000 = scalar_lea.vmem %s885, %s999 [#allocation2]
                %s1001 = smul.u32 8, %s998
                %s1002 = scalar_lea.vmem %s896, %s1001
                // While loop
                $region98: #{tpu_custom_call.1} parent=89 // loop_pre_header
                  _
                $region99: #{tpu_custom_call.1} parent=89 // loop_header
                  %s1004 = sphi 0, %s1006
                  %p1005 = scmp.ge.s32.totalorder %s1004, %s997
                  %s1009 = sphi 0, %s1016
                  %s1010 = sphi %s1000, %s1019
                  %s1011 = sphi %s1002, %s1020
                $region100: #{tpu_custom_call.1} parent=89 // loop_header_branch
                  %1008 = sbr.rel (%p1005) target = $region104
                $region101: #{tpu_custom_call.1} parent=89 // loop_body
                  %v1012 = vld [vmem:[%s1010] sm:$0xff]
                  %1013 = vst [vmem:[%s1011] sm:$0xff] %v1012
                  %s1014 = sadd.s32 1, %s1009
                  %p1015 = scmp.ge.s32.totalorder %s1014, %s997
                  %s1016 = scalar_select %p1015, 0, %s1014
                  %s1017 = smul.u32 %s1016, 8
                  %s1018 = smul.u32 %s1016, 8
                  %s1019 = scalar_lea.vmem %s1000, %s1017 [#allocation2]
                  %s1020 = scalar_lea.vmem %s1002, %s1018
                $region102: #{tpu_custom_call.1} parent=89 // loop_footer
                  %s1006 = sadd.s32 %s1004, 1
                $region103: #{tpu_custom_call.1} parent=89 // loop_footer_branch
                  %1003 = sbr.rel target = $region99
                $region104: #{tpu_custom_call.1} parent=89 // loop_exit
                  _
              $region90: #{tpu_custom_call.1} parent=67 // pred_fallthru
                _
              // Predicated region
              $region105: #{tpu_custom_call.1} parent=67 // pred_check
                _
              $region106: #{tpu_custom_call.1} parent=67 // pred_check_branch
                %1022 = sbr.rel target = $region108
              $region107: #{tpu_custom_call.1} parent=67 // pred_region
                _
              $region108: #{tpu_custom_call.1} parent=67 // pred_fallthru
                _
            $region68: #{tpu_custom_call.1} parent=63 // pred_fallthru
              _
            // Predicated region
            $region69: #{tpu_custom_call.1} parent=63 // pred_check
              _
            $region70: #{tpu_custom_call.1} parent=63 // pred_check_branch
              %903 = sbr.rel target = $region72
            $region71: #{tpu_custom_call.1} parent=63 // pred_region
              %s905 = sdiv.u32.pop %s892, 7
              %s906 = srem.u32.pop %s892, 7
              // While loop
              $region73: #{tpu_custom_call.1} parent=71 // loop_pre_header
                _
              $region74: #{tpu_custom_call.1} parent=71 // loop_header
                %s908 = sphi 0, %s910
                %p909 = scmp.ge.s32.totalorder %s908, %s905
                %s913 = sphi 0, %s932
                %s914 = sphi %s885, %s935
                %s915 = sphi %s896, %s936
              $region75: #{tpu_custom_call.1} parent=71 // loop_header_branch
                %912 = sbr.rel (%p909) target = $region79
              $region76: #{tpu_custom_call.1} parent=71 // loop_body
                %v916 = vld [vmem:[%s914] sm:$0xff]
                %917 = vst [vmem:[%s915] sm:$0xff] %v916
                %v918 = vld [vmem:[%s914 + $0x8] sm:$0xff]
                %919 = vst [vmem:[%s915 + $0x8] sm:$0xff] %v918
                %v920 = vld [vmem:[%s914 + $0x10] sm:$0xff]
                %921 = vst [vmem:[%s915 + $0x10] sm:$0xff] %v920
                %v922 = vld [vmem:[%s914 + $0x18] sm:$0xff]
                %923 = vst [vmem:[%s915 + $0x18] sm:$0xff] %v922
                %v924 = vld [vmem:[%s914 + $0x20] sm:$0xff]
                %925 = vst [vmem:[%s915 + $0x20] sm:$0xff] %v924
                %v926 = vld [vmem:[%s914 + $0x28] sm:$0xff]
                %927 = vst [vmem:[%s915 + $0x28] sm:$0xff] %v926
                %v928 = vld [vmem:[%s914 + $0x30] sm:$0xff]
                %929 = vst [vmem:[%s915 + $0x30] sm:$0xff] %v928
                %s930 = sadd.s32 1, %s913
                %p931 = scmp.ge.s32.totalorder %s930, %s905
                %s932 = scalar_select %p931, 0, %s930
                %s933 = smul.u32 %s932, 56
                %s934 = smul.u32 %s932, 56
                %s935 = scalar_lea.vmem %s885, %s933 [#allocation2]
                %s936 = scalar_lea.vmem %s896, %s934
              $region77: #{tpu_custom_call.1} parent=71 // loop_footer
                %s910 = sadd.s32 %s908, 1
              $region78: #{tpu_custom_call.1} parent=71 // loop_footer_branch
                %907 = sbr.rel target = $region74
              $region79: #{tpu_custom_call.1} parent=71 // loop_exit
                _
              %s937 = sdiv.u32.pop %s892, 7
              %s938 = srem.u32.pop %s892, 7
              %s939 = smul.u32 %s937, 7
              %s940 = smul.u32 8, %s939
              %s941 = scalar_lea.vmem %s885, %s940 [#allocation2]
              %s942 = smul.u32 8, %s939
              %s943 = scalar_lea.vmem %s896, %s942
              // While loop
              $region80: #{tpu_custom_call.1} parent=71 // loop_pre_header
                _
              $region81: #{tpu_custom_call.1} parent=71 // loop_header
                %s945 = sphi 0, %s947
                %p946 = scmp.ge.s32.totalorder %s945, %s938
                %s950 = sphi 0, %s957
                %s951 = sphi %s941, %s960
                %s952 = sphi %s943, %s961
              $region82: #{tpu_custom_call.1} parent=71 // loop_header_branch
                %949 = sbr.rel (%p946) target = $region86
              $region83: #{tpu_custom_call.1} parent=71 // loop_body
                %v953 = vld [vmem:[%s951] sm:$0xff]
                %954 = vst [vmem:[%s952] sm:$0xff] %v953
                %s955 = sadd.s32 1, %s950
                %p956 = scmp.ge.s32.totalorder %s955, %s938
                %s957 = scalar_select %p956, 0, %s955
                %s958 = smul.u32 %s957, 8
                %s959 = smul.u32 %s957, 8
                %s960 = scalar_lea.vmem %s941, %s958 [#allocation2]
                %s961 = scalar_lea.vmem %s943, %s959
              $region84: #{tpu_custom_call.1} parent=71 // loop_footer
                %s947 = sadd.s32 %s945, 1
              $region85: #{tpu_custom_call.1} parent=71 // loop_footer_branch
                %944 = sbr.rel target = $region81
              $region86: #{tpu_custom_call.1} parent=71 // loop_exit
                _
            $region72: #{tpu_custom_call.1} parent=63 // pred_fallthru
              _
          $region64: #{tpu_custom_call.1} parent=59 // pred_fallthru
            _
          %1023 = vnop
        $region60: #{tpu_custom_call.1} parent=55 // pred_fallthru
          _
      $region56: #{tpu_custom_call.1} parent=5 // pred_fallthru
        _
      %p1024 = scmp.le.s32.totalorder 2, %s15
      // Predicated region
      $region109: #{tpu_custom_call.1} parent=5 // pred_check
        %p1025 = pneg %p1024
      $region110: #{tpu_custom_call.1} parent=5 // pred_check_branch
        %1027 = sbr.rel (%p1025) target = $region112
      $region111: #{tpu_custom_call.1} parent=5 // pred_region
        %s1028 = ssub.s32 %s15, 2
        // Predicated region
        $region113: #{tpu_custom_call.1} parent=111 // pred_check
          %p1029 = pneg %p238
        $region114: #{tpu_custom_call.1} parent=111 // pred_check_branch
          %1031 = sbr.rel (%p1029) target = $region116
        $region115: #{tpu_custom_call.1} parent=111 // pred_region
          %s1032 = sand.u32 %s223, 1
          %s1033 = sand.u32 %s223, 1
          %s1034 = smul.addr %s1033, 56
          %s1035 = scalar_lea.vmem [#allocation2], %s1034
        $region116: #{tpu_custom_call.1} parent=111 // pred_fallthru
          _
      $region112: #{tpu_custom_call.1} parent=5 // pred_fallthru
        _
    $region6: #{tpu_custom_call.1} parent=1 // loop_footer
      %s19 = sadd.s32 1, %s15
    $region7: #{tpu_custom_call.1} parent=1 // loop_footer_branch
      %14 = sbr.rel target = $region3
    $region8: #{tpu_custom_call.1} parent=1 // loop_exit
      _

</llo_original>
